<compile_context>
chip_gen: v6e
topology: v6e:2x2x1
jax: 0.10.0
libtpu: 0.0.40
codegen_flags: <defaults>
</compile_context>

<pallas_src>
import jax
import jax.numpy as jnp
from jax.experimental import pallas as pl
from jax.experimental.pallas import tpu as pltpu

LANE = 128


def _round_up(n, m):
    return ((n + m - 1) // m) * m


def cybsec_mlp_kernel(x_ref, w1_ref, b1_ref, w2_ref, b2_ref, w3_ref, b3_ref, o_ref):
    # (x + 1) / 2 preprocessing fused into the kernel (VPU work rides under DMA slack).
    x = (x_ref[...] + 1.0) * 0.5                                         # (tm, in_f) f32

    h1 = jnp.dot(x, w1_ref[...], preferred_element_type=jnp.float32) + b1_ref[...]
    h1 = jnp.maximum(h1, 0.0)

    h2 = jnp.dot(h1, w2_ref[...], preferred_element_type=jnp.float32) + b2_ref[...]
    h2 = jnp.maximum(h2, 0.0)

    out = jnp.dot(h2, w3_ref[...], preferred_element_type=jnp.float32) + b3_ref[...]

    # QuantIdentity(quant_type='binary', const scale=1, min=-1, max=1):
    # binary sign quantization -> {-1, +1}; sign(0) maps to +1 (Brevitas convention).
    o_ref[...] = jnp.where(out >= 0.0, 1.0, -1.0).astype(o_ref.dtype)


def prepare_params(w1, b1, w2, b2, w3, b3):
    """Zero-pad the hidden dimension to lane width (128) so intermediates are lane-dense.

    Padding is exact in f32: padded hidden columns get weight 0 / bias 0 -> ReLU(0) = 0,
    and padded rows of the next weight matrix are 0, so they contribute exactly 0.0.
    The output dimension is NOT padded (kernel stores only the real columns).
    """
    w1 = jnp.asarray(w1, jnp.float32)
    w2 = jnp.asarray(w2, jnp.float32)
    w3 = jnp.asarray(w3, jnp.float32)
    b1 = jnp.asarray(b1, jnp.float32).reshape(1, -1)
    b2 = jnp.asarray(b2, jnp.float32).reshape(1, -1)
    b3 = jnp.asarray(b3, jnp.float32).reshape(1, -1)

    in_f, hid = w1.shape
    out_f = w3.shape[1]
    hid_p = _round_up(hid, LANE)

    w1p = jnp.zeros((in_f, hid_p), jnp.float32).at[:, :hid].set(w1)
    b1p = jnp.zeros((1, hid_p), jnp.float32).at[:, :hid].set(b1)
    w2p = jnp.zeros((hid_p, hid_p), jnp.float32).at[:hid, :hid].set(w2)
    b2p = jnp.zeros((1, hid_p), jnp.float32).at[:, :hid].set(b2)
    w3p = jnp.zeros((hid_p, out_f), jnp.float32).at[:hid, :].set(w3)
    b3p = b3
    return w1p, b1p, w2p, b2p, w3p, b3p


def _choose_tile(batch, block_m):
    """Pick the batch tile: big enough to amortize per-step overhead, small enough to
    keep >= 4 grid steps on large batches (v7x has 2 TCs) and stay in scoped VMEM."""
    if batch <= 8:
        return 8
    quarter = _round_up(pl.cdiv(batch, 4), 16)           # >= 4 steps when batch is large
    tm = min(_round_up(block_m, 16), quarter, _round_up(batch, 8))
    return max(tm, 8)


def cybsec_mlp_forward(x, w1, b1, w2, b2, w3, b3, *, block_m=2048):
    batch, in_f = x.shape
    out_f = w3.shape[1]

    w1p, b1p, w2p, b2p, w3p, b3p = prepare_params(w1, b1, w2, b2, w3, b3)

    x = jnp.asarray(x, jnp.float32)
    tm = _choose_tile(batch, block_m)
    grid = (pl.cdiv(batch, tm),)   # ragged last tile: OOB reads unused, OOB writes dropped

    tiled = lambda shape: pl.BlockSpec(shape, lambda i: (i, 0))      # streamed per tile
    resident = lambda shape: pl.BlockSpec(shape, lambda i: (0, 0))   # stays in VMEM

    return pl.pallas_call(
        cybsec_mlp_kernel,
        out_shape=jax.ShapeDtypeStruct((batch, out_f), jnp.float32),
        grid=grid,
        in_specs=[
            tiled((tm, in_f)),
            resident(w1p.shape), resident(b1p.shape),
            resident(w2p.shape), resident(b2p.shape),
            resident(w3p.shape), resident(b3p.shape),
        ],
        out_specs=tiled((tm, out_f)),
        compiler_params=pltpu.CompilerParams(
            dimension_semantics=("parallel",)),
    )(x, w1p, b1p, w2p, b2p, w3p, b3p)


def init_params(key, in_features, hidden, out_features):
    # TODO(synk): the Brevitas quantized internals of the "pretrained" MLP are not given
    # by the spec; it is modeled here as a plain float Linear/ReLU stack.
    ks = jax.random.split(key, 6)
    scale1 = 1.0 / jnp.sqrt(in_features)
    scale2 = 1.0 / jnp.sqrt(hidden)
    w1 = jax.random.uniform(ks[0], (in_features, hidden), jnp.float32, -scale1, scale1)
    b1 = jax.random.uniform(ks[1], (1, hidden), jnp.float32, -scale1, scale1)
    w2 = jax.random.uniform(ks[2], (hidden, hidden), jnp.float32, -scale2, scale2)
    b2 = jax.random.uniform(ks[3], (1, hidden), jnp.float32, -scale2, scale2)
    w3 = jax.random.uniform(ks[4], (hidden, out_features), jnp.float32, -scale2, scale2)
    b3 = jax.random.uniform(ks[5], (1, out_features), jnp.float32, -scale2, scale2)
    return w1, b1, w2, b2, w3, b3


if __name__ == "__main__":
    # Small shapes consistent with the MLP forward: [batch, features]
    batch, in_features, hidden, out_features = 8, 64, 32, 8

    key = jax.random.PRNGKey(0)
    k_x, k_p = jax.random.split(key)

    x = jax.random.uniform(k_x, (batch, in_features), jnp.float32, -1.0, 1.0)
    w1, b1, w2, b2, w3, b3 = init_params(k_p, in_features, hidden, out_features)

    out = cybsec_mlp_forward(x, w1, b1, w2, b2, w3, b3)
    out = jax.block_until_ready(out)
    assert out.shape == (batch, out_features)
    assert out.dtype == jnp.float32

    # Pure-JAX fp32 reference of the original module forward (highest matmul precision).
    hp = jax.lax.Precision.HIGHEST
    h = (x + 1.0) * 0.5
    h = jnp.maximum(jnp.dot(h, w1, precision=hp) + b1, 0.0)
    h = jnp.maximum(jnp.dot(h, w2, precision=hp) + b2, 0.0)
    logits = jnp.dot(h, w3, precision=hp) + b3
    ref = jnp.where(logits >= 0.0, 1.0, -1.0)

    # Every output is exactly +/-1, and signs agree with the reference everywhere the
    # reference logit is outside floating-point noise of zero.
    assert bool(jnp.all(jnp.abs(out) == 1.0))
    confident = jnp.abs(logits) > 1e-3
    assert bool(jnp.all(jnp.where(confident, out == ref, True))), \
        "sign mismatch vs fp32 reference"

    print("KERNEL_OK")
</pallas_src>

<mosaic_0001>
module attributes {stable_mosaic.version = 11 : i64} {
  func.func @cybsec_mlp_kernel(%arg0: i32, %arg1: memref<8x64xf32, #tpu.memory_space<vmem>>, %arg2: memref<64x128xf32, #tpu.memory_space<vmem>>, %arg3: memref<1x128xf32, #tpu.memory_space<vmem>>, %arg4: memref<128x128xf32, #tpu.memory_space<vmem>>, %arg5: memref<1x128xf32, #tpu.memory_space<vmem>>, %arg6: memref<128x8xf32, #tpu.memory_space<vmem>>, %arg7: memref<1x8xf32, #tpu.memory_space<vmem>>, %arg8: memref<8x8xf32, #tpu.memory_space<vmem>>) attributes {dimension_semantics = [#tpu.dimension_semantics<parallel>], iteration_bounds = array<i64: 1>, scalar_prefetch = 0 : i64, scratch_operands = 0 : i64, tpu.core_type = #tpu.core_type<tc>, window_params = [{transform_indices = @transform_0, window_bounds = array<i64: 8, 64>}, {pipeline_mode = #tpu.pipeline_mode<synchronous>, transform_indices = @transform_1, window_bounds = array<i64: 64, 128>}, {pipeline_mode = #tpu.pipeline_mode<synchronous>, transform_indices = @transform_2, window_bounds = array<i64: 1, 128>}, {pipeline_mode = #tpu.pipeline_mode<synchronous>, transform_indices = @transform_3, window_bounds = array<i64: 128, 128>}, {pipeline_mode = #tpu.pipeline_mode<synchronous>, transform_indices = @transform_4, window_bounds = array<i64: 1, 128>}, {pipeline_mode = #tpu.pipeline_mode<synchronous>, transform_indices = @transform_5, window_bounds = array<i64: 128, 8>}, {pipeline_mode = #tpu.pipeline_mode<synchronous>, transform_indices = @transform_6, window_bounds = array<i64: 1, 8>}, {transform_indices = @transform_7, window_bounds = array<i64: 8, 8>}]} {
    %c0 = arith.constant 0 : index
    %c0_0 = arith.constant 0 : index
    %0 = vector.load %arg1[%c0, %c0_0] : memref<8x64xf32, #tpu.memory_space<vmem>>, vector<8x64xf32>
    %cst = arith.constant 1.000000e+00 : f32
    %1 = vector.broadcast %cst : f32 to vector<8x64xf32>
    %2 = arith.addf %0, %1 : vector<8x64xf32>
    %cst_1 = arith.constant 5.000000e-01 : f32
    %3 = vector.broadcast %cst_1 : f32 to vector<8x64xf32>
    %4 = arith.mulf %2, %3 : vector<8x64xf32>
    %c0_2 = arith.constant 0 : index
    %c0_3 = arith.constant 0 : index
    %5 = vector.load %arg2[%c0_2, %c0_3] : memref<64x128xf32, #tpu.memory_space<vmem>>, vector<64x128xf32>
    %cst_4 = arith.constant dense<0.000000e+00> : vector<8x128xf32>
    %6 = tpu.matmul %4, %5, %cst_4 {dimension_numbers = #tpu.dot_dimension_numbers<[1], [0], [0], [1], [0, 0, 1, 1], [], []>} : vector<8x64xf32>, vector<64x128xf32>, vector<8x128xf32> -> vector<8x128xf32>
    %c0_5 = arith.constant 0 : index
    %c0_6 = arith.constant 0 : index
    %7 = vector.load %arg3[%c0_5, %c0_6] : memref<1x128xf32, #tpu.memory_space<vmem>>, vector<1x128xf32>
    %8 = vector.broadcast %7 : vector<1x128xf32> to vector<8x128xf32>
    %9 = arith.addf %6, %8 : vector<8x128xf32>
    %cst_7 = arith.constant 0.000000e+00 : f32
    %10 = vector.broadcast %cst_7 : f32 to vector<8x128xf32>
    %11 = arith.maximumf %9, %10 : vector<8x128xf32>
    %c0_8 = arith.constant 0 : index
    %c0_9 = arith.constant 0 : index
    %12 = vector.load %arg4[%c0_8, %c0_9] : memref<128x128xf32, #tpu.memory_space<vmem>>, vector<128x128xf32>
    %cst_10 = arith.constant dense<0.000000e+00> : vector<8x128xf32>
    %13 = tpu.matmul %11, %12, %cst_10 {dimension_numbers = #tpu.dot_dimension_numbers<[1], [0], [0], [1], [0, 0, 1, 1], [], []>} : vector<8x128xf32>, vector<128x128xf32>, vector<8x128xf32> -> vector<8x128xf32>
    %c0_11 = arith.constant 0 : index
    %c0_12 = arith.constant 0 : index
    %14 = vector.load %arg5[%c0_11, %c0_12] : memref<1x128xf32, #tpu.memory_space<vmem>>, vector<1x128xf32>
    %15 = vector.broadcast %14 : vector<1x128xf32> to vector<8x128xf32>
    %16 = arith.addf %13, %15 : vector<8x128xf32>
    %cst_13 = arith.constant 0.000000e+00 : f32
    %17 = vector.broadcast %cst_13 : f32 to vector<8x128xf32>
    %18 = arith.maximumf %16, %17 : vector<8x128xf32>
    %c0_14 = arith.constant 0 : index
    %c0_15 = arith.constant 0 : index
    %19 = vector.load %arg6[%c0_14, %c0_15] : memref<128x8xf32, #tpu.memory_space<vmem>>, vector<128x8xf32>
    %cst_16 = arith.constant dense<0.000000e+00> : vector<8x8xf32>
    %20 = tpu.matmul %18, %19, %cst_16 {dimension_numbers = #tpu.dot_dimension_numbers<[1], [0], [0], [1], [0, 0, 1, 1], [], []>} : vector<8x128xf32>, vector<128x8xf32>, vector<8x8xf32> -> vector<8x8xf32>
    %c0_17 = arith.constant 0 : index
    %c0_18 = arith.constant 0 : index
    %21 = vector.load %arg7[%c0_17, %c0_18] : memref<1x8xf32, #tpu.memory_space<vmem>>, vector<1x8xf32>
    %22 = vector.broadcast %21 : vector<1x8xf32> to vector<8x8xf32>
    %23 = arith.addf %20, %22 : vector<8x8xf32>
    %cst_19 = arith.constant 0.000000e+00 : f32
    %24 = vector.broadcast %cst_19 : f32 to vector<8x8xf32>
    %25 = arith.cmpf oge, %23, %24 : vector<8x8xf32>
    %cst_20 = arith.constant 1.000000e+00 : f32
    %cst_21 = arith.constant -1.000000e+00 : f32
    %26 = vector.broadcast %cst_20 : f32 to vector<8x8xf32>
    %27 = vector.broadcast %cst_21 : f32 to vector<8x8xf32>
    %28 = arith.select %25, %26, %27 : vector<8x8xi1>, vector<8x8xf32>
    %c0_22 = arith.constant 0 : index
    %c0_23 = arith.constant 0 : index
    %29 = vector.load %arg8[%c0_22, %c0_23] : memref<8x8xf32, #tpu.memory_space<vmem>>, vector<8x8xf32>
    tpu.vector_store %arg8[%c0_22, %c0_23], %28 {strides = array<i32>} : memref<8x8xf32, #tpu.memory_space<vmem>>, vector<8x8xf32>,
    return
  }
  func.func @transform_0(%arg0: i32) -> (i32, i32) {
    %c0_i32 = arith.constant 0 : i32
    %c0_i32_0 = arith.constant 0 : i32
    return %arg0, %c0_i32 : i32, i32
  }
  func.func @transform_1(%arg0: i32) -> (i32, i32) {
    %c0_i32 = arith.constant 0 : i32
    %c0_i32_0 = arith.constant 0 : i32
    %c0_i32_1 = arith.constant 0 : i32
    return %c0_i32, %c0_i32_0 : i32, i32
  }
  func.func @transform_2(%arg0: i32) -> (i32, i32) {
    %c0_i32 = arith.constant 0 : i32
    %c0_i32_0 = arith.constant 0 : i32
    %c0_i32_1 = arith.constant 0 : i32
    return %c0_i32, %c0_i32_0 : i32, i32
  }
  func.func @transform_3(%arg0: i32) -> (i32, i32) {
    %c0_i32 = arith.constant 0 : i32
    %c0_i32_0 = arith.constant 0 : i32
    %c0_i32_1 = arith.constant 0 : i32
    return %c0_i32, %c0_i32_0 : i32, i32
  }
  func.func @transform_4(%arg0: i32) -> (i32, i32) {
    %c0_i32 = arith.constant 0 : i32
    %c0_i32_0 = arith.constant 0 : i32
    %c0_i32_1 = arith.constant 0 : i32
    return %c0_i32, %c0_i32_0 : i32, i32
  }
  func.func @transform_5(%arg0: i32) -> (i32, i32) {
    %c0_i32 = arith.constant 0 : i32
    %c0_i32_0 = arith.constant 0 : i32
    %c0_i32_1 = arith.constant 0 : i32
    return %c0_i32, %c0_i32_0 : i32, i32
  }
  func.func @transform_6(%arg0: i32) -> (i32, i32) {
    %c0_i32 = arith.constant 0 : i32
    %c0_i32_0 = arith.constant 0 : i32
    %c0_i32_1 = arith.constant 0 : i32
    return %c0_i32, %c0_i32_0 : i32, i32
  }
  func.func @transform_7(%arg0: i32) -> (i32, i32) {
    %c0_i32 = arith.constant 0 : i32
    %c0_i32_0 = arith.constant 0 : i32
    return %arg0, %c0_i32 : i32, i32
  }
}

</mosaic_0001>

<llo_original>
// kernel: tpu_custom_call.1
$region0: #{tpu_custom_call.1}
  #allocation0 [shape = 'u32[]', space=smem, size = 0x4, offset = 0x4, fixed_abs, tag = 'smem constant byte address 0x4 - core index']
  #allocation1 [shape = 'u32[144,128]{1,0:T(1,128)}', space=vmem, size = 0x12000, scoped, tag = 'internal scratch']
  %s0 = inlined_call_operand.vmem [shape: f32[8,64], index: 0, kind: input, shape index: {}]
  %s1 = inlined_call_operand.hbm [shape: f32[64,128], index: 1, kind: input, shape index: {}]
  %s2 = inlined_call_operand.vmem [shape: f32[1,128], index: 2, kind: input, shape index: {}]
  %s3 = inlined_call_operand.vmem [shape: f32[128,128], index: 3, kind: input, shape index: {}]
  %s4 = inlined_call_operand.hbm [shape: f32[1,128], index: 4, kind: input, shape index: {}]
  %s5 = inlined_call_operand.vmem [shape: f32[128,8], index: 5, kind: input, shape index: {}]
  %s6 = inlined_call_operand.vmem [shape: f32[1,8], index: 6, kind: input, shape index: {}]
  %s7 = inlined_call_operand.hbm [shape: f32[8,8], index: 7, kind: output, shape index: {}]
  %s8 = sld [smem:[#allocation0]]
  $region46: #{tpu_custom_call.1} parent=0
    _
  %s10 = ssub.s32 1, %s8
  %s11 = scalar_select 0, %s10, %s8
  $region1: #{tpu_custom_call.1} parent=0
    #allocation2 [shape = 'u8[32768]{0}', space=vmem, size = 0x8000, scoped, tag = 'input window, operand 1, single buffered']
    #allocation3 [shape = 's32[1]{0}', space=sflag, size = 0x4, scoped, tag = 'scoped memory for tpu_custom_call.1']
    #allocation4 [shape = 's32[1]{0}', space=sflag, size = 0x4, scoped, tag = 'scoped memory for tpu_custom_call.1']
    #allocation5 [shape = 'u8[512]{0}', space=vmem, size = 0x400, scoped, tag = 'input window, operand 4, single buffered']
    #allocation6 [shape = 's32[1]{0}', space=sflag, size = 0x4, scoped, tag = 'scoped memory for tpu_custom_call.1']
    #allocation7 [shape = 'u8[4096]{0}', space=vmem, size = 0x1000, scoped, tag = 'output window, operand 0, single buffered']
    %12 = vsyncpa [#allocation3], 0
    %13 = vsyncpa [#allocation6], 0
    %14 = vsyncpa [#allocation4], 0
    // Predicated region
    $region2: #{tpu_custom_call.1} parent=1 // pred_check
      _
    $region3: #{tpu_custom_call.1} parent=1 // pred_check_branch
      %16 = sbr.rel (0) target = $region5
    $region4: #{tpu_custom_call.1} parent=1 // pred_region
      _
    $region5: #{tpu_custom_call.1} parent=1 // pred_fallthru
      _
    // Predicated region
    $region6: #{tpu_custom_call.1} parent=1 // pred_check
      _
    $region7: #{tpu_custom_call.1} parent=1 // pred_check_branch
      %18 = sbr.rel (0) target = $region9
    $region8: #{tpu_custom_call.1} parent=1 // pred_region
      %s20 = ssub.s32 1024, 1024
      %21 = vsyncadd [#allocation3], %s20
      %s22 = sshll.u32 [#allocation2], 4
      %s23 = int_to_ptr.vmem [resolvable:$true] %s22
      %28 = dma.hbm_to_vmem [thread:$0]  %s1, 1024, %s23, [#allocation3], 128, 128, 8
    $region9: #{tpu_custom_call.1} parent=1 // pred_fallthru
      _
    // Predicated region
    $region10: #{tpu_custom_call.1} parent=1 // pred_check
      _
    $region11: #{tpu_custom_call.1} parent=1 // pred_check_branch
      %30 = sbr.rel (0) target = $region13
    $region12: #{tpu_custom_call.1} parent=1 // pred_region
      _
    $region13: #{tpu_custom_call.1} parent=1 // pred_fallthru
      _
    // Predicated region
    $region14: #{tpu_custom_call.1} parent=1 // pred_check
      _
    $region15: #{tpu_custom_call.1} parent=1 // pred_check_branch
      %32 = sbr.rel (0) target = $region17
    $region16: #{tpu_custom_call.1} parent=1 // pred_region
      _
    $region17: #{tpu_custom_call.1} parent=1 // pred_fallthru
      _
    // Predicated region
    $region18: #{tpu_custom_call.1} parent=1 // pred_check
      _
    $region19: #{tpu_custom_call.1} parent=1 // pred_check_branch
      %34 = sbr.rel (0) target = $region21
    $region20: #{tpu_custom_call.1} parent=1 // pred_region
      %s36 = ssub.s32 16, 16
      %37 = vsyncadd [#allocation6], %s36
      %s39 = sshll.u32 [#allocation5], 4
      %s40 = int_to_ptr.vmem [resolvable:$true] %s39
      %42 = dma.hbm_to_vmem [thread:$0]  %s4, 16, %s40, [#allocation6]
    $region21: #{tpu_custom_call.1} parent=1 // pred_fallthru
      _
    // Predicated region
    $region22: #{tpu_custom_call.1} parent=1 // pred_check
      _
    $region23: #{tpu_custom_call.1} parent=1 // pred_check_branch
      %44 = sbr.rel (0) target = $region25
    $region24: #{tpu_custom_call.1} parent=1 // pred_region
      _
    $region25: #{tpu_custom_call.1} parent=1 // pred_fallthru
      _
    // Predicated region
    $region26: #{tpu_custom_call.1} parent=1 // pred_check
      _
    $region27: #{tpu_custom_call.1} parent=1 // pred_check_branch
      %46 = sbr.rel (0) target = $region29
    $region28: #{tpu_custom_call.1} parent=1 // pred_region
      _
    $region29: #{tpu_custom_call.1} parent=1 // pred_fallthru
      _
    // Predicated region
    $region30: #{tpu_custom_call.1} parent=1 // pred_check
      _
    $region31: #{tpu_custom_call.1} parent=1 // pred_check_branch
      %48 = sbr.rel (0) target = $region33
    $region32: #{tpu_custom_call.1} parent=1 // pred_region
      %49 = dma.done [#allocation3], 1024
    $region33: #{tpu_custom_call.1} parent=1 // pred_fallthru
      _
    // Predicated region
    $region34: #{tpu_custom_call.1} parent=1 // pred_check
      _
    $region35: #{tpu_custom_call.1} parent=1 // pred_check_branch
      %51 = sbr.rel (0) target = $region37
    $region36: #{tpu_custom_call.1} parent=1 // pred_region
      %52 = dma.done [#allocation6], 16
    $region37: #{tpu_custom_call.1} parent=1 // pred_fallthru
      _
    %v53 = vld [vmem:[%s0] sm:$0xff]
    %v54 = vadd.f32 %v53, 1.0
    %v55 = vmul.f32 %v54, 0.5
    %v56 = vld [vmem:[#allocation2] sm:$0xff]
    %v57 = vld [vmem:[#allocation2 + $0x8] sm:$0xff]
    %v58 = vld [vmem:[#allocation2 + $0x10] sm:$0xff]
    %v59 = vld [vmem:[#allocation2 + $0x18] sm:$0xff]
    %v60 = vld [vmem:[#allocation2 + $0x20] sm:$0xff]
    %v61 = vld [vmem:[#allocation2 + $0x28] sm:$0xff]
    %v62 = vld [vmem:[#allocation2 + $0x30] sm:$0xff]
    %v63 = vld [vmem:[#allocation2 + $0x38] sm:$0xff]
    %v64 = vld [vmem:[%s2] sm:$0x1]
    %v66 = vlaneseq
    %v67 = vshrl.u32 %v66, 7
    %v68 = vsub.s32 0, %v67
    %v69 = vrot.slane %v64, %v68
    %vm71 = vcmask 523264
    %v73 = vsel %vm71, %v55, 0
    %75 = vmatprep.subr.mxu0 0.0
    %76 = vmatpush1.msra.mxu0 0.0
    %77 = vmatprep.subr.mxu0 0.0
    %78 = vmatpush1.msra.mxu0 0.0
    %79 = vmatprep.subr.mxu0 0.0
    %80 = vmatpush1.msra.mxu0 0.0
    %81 = vmatprep.subr.mxu0 0.0
    %82 = vmatpush1.msra.mxu0 0.0
    %83 = vmatprep.subr.mxu0 0.0
    %84 = vmatpush1.msra.mxu0 0.0
    %85 = vmatprep.subr.mxu0 0.0
    %86 = vmatpush1.msra.mxu0 0.0
    %87 = vmatprep.subr.mxu0 0.0
    %88 = vmatpush1.msra.mxu0 0.0
    %89 = vmatprep.subr.mxu0 0.0
    %90 = vmatpush1.msra.mxu0 0.0
    %91 = vmatprep.subr.mxu0 0.0
    %92 = vmatpush1.msra.mxu0 %v63
    %93 = vmatprep.subr.mxu0 0.0
    %94 = vmatpush1.msra.mxu0 %v62
    %95 = vmatprep.subr.mxu0 0.0
    %96 = vmatpush1.msra.mxu0 %v61
    %97 = vmatprep.subr.mxu0 0.0
    %98 = vmatpush1.msra.mxu0 %v60
    %99 = vmatprep.subr.mxu0 0.0
    %100 = vmatpush1.msra.mxu0 %v59
    %101 = vmatprep.subr.mxu0 0.0
    %102 = vmatpush1.msra.mxu0 %v58
    %103 = vmatprep.subr.mxu0 0.0
    %104 = vmatpush1.msra.mxu0 %v57
    %105 = vmatprep.subr.mxu0 0.0
    %106 = vmatpush1.msra.mxu0 %v56
    %107 = vmatprep.subr.mxu0 0.0
    %108 = vmatpush2.msra.mxu0 0.0
    %109 = vmatprep.subr.mxu0 0.0
    %110 = vmatpush2.msra.mxu0 0.0
    %111 = vmatprep.subr.mxu0 0.0
    %112 = vmatpush2.msra.mxu0 0.0
    %113 = vmatprep.subr.mxu0 0.0
    %114 = vmatpush2.msra.mxu0 0.0
    %115 = vmatprep.subr.mxu0 0.0
    %116 = vmatpush2.msra.mxu0 0.0
    %117 = vmatprep.subr.mxu0 0.0
    %118 = vmatpush2.msra.mxu0 0.0
    %119 = vmatprep.subr.mxu0 0.0
    %120 = vmatpush2.msra.mxu0 0.0
    %121 = vmatprep.subr.mxu0 0.0
    %122 = vmatpush2.msra.mxu0 0.0
    %123 = vmatprep.subr.mxu0 0.0
    %124 = vmatpush2.msra.mxu0 0.0
    %125 = vmatprep.subr.mxu0 0.0
    %126 = vmatpush2.msra.mxu0 0.0
    %127 = vmatprep.subr.mxu0 0.0
    %128 = vmatpush2.msra.mxu0 0.0
    %129 = vmatprep.subr.mxu0 0.0
    %130 = vmatpush2.msra.mxu0 0.0
    %131 = vmatprep.subr.mxu0 0.0
    %132 = vmatpush2.msra.mxu0 0.0
    %133 = vmatprep.subr.mxu0 0.0
    %134 = vmatpush2.msra.mxu0 0.0
    %135 = vmatprep.subr.mxu0 0.0
    %136 = vmatpush2.msra.mxu0 0.0
    %137 = vmatprep.subr.mxu0 0.0
    %138 = vmatpush2.msra.mxu0 0.0
    %139 = vmatprep.mubr.f32.mxu0 0.0
    %140 = vmatmul.mubr.f32.gmra.mxu0 %v73
    %v141 = vpop.f32.mrf.mxu0
    %v142 = vadd.f32 %v69, %v141
    %v143 = vpop.f32.mrf.mxu0
    %144 = vdwg.mxu0
    %v145 = vmax.f32 %v142, 0.0
    %v146 = vld [vmem:[%s3] sm:$0xff]
    %v147 = vld [vmem:[%s3 + $0x8] sm:$0xff]
    %v148 = vld [vmem:[%s3 + $0x10] sm:$0xff]
    %v149 = vld [vmem:[%s3 + $0x18] sm:$0xff]
    %v150 = vld [vmem:[%s3 + $0x20] sm:$0xff]
    %v151 = vld [vmem:[%s3 + $0x28] sm:$0xff]
    %v152 = vld [vmem:[%s3 + $0x30] sm:$0xff]
    %v153 = vld [vmem:[%s3 + $0x38] sm:$0xff]
    %v154 = vld [vmem:[%s3 + $0x40] sm:$0xff]
    %v155 = vld [vmem:[%s3 + $0x48] sm:$0xff]
    %v156 = vld [vmem:[%s3 + $0x50] sm:$0xff]
    %v157 = vld [vmem:[%s3 + $0x58] sm:$0xff]
    %v158 = vld [vmem:[%s3 + $0x60] sm:$0xff]
    %v159 = vld [vmem:[%s3 + $0x68] sm:$0xff]
    %v160 = vld [vmem:[%s3 + $0x70] sm:$0xff]
    %v161 = vld [vmem:[%s3 + $0x78] sm:$0xff]
    %v162 = vld [vmem:[#allocation5] sm:$0x1]
    %v164 = vlaneseq
    %v165 = vshrl.u32 %v164, 7
    %v166 = vsub.s32 0, %v165
    %v167 = vrot.slane %v162, %v166
    %169 = vmatprep.subr.mxu0 0.0
    %170 = vmatpush1.msra.mxu0 %v161
    %171 = vmatprep.subr.mxu0 0.0
    %172 = vmatpush1.msra.mxu0 %v160
    %173 = vmatprep.subr.mxu0 0.0
    %174 = vmatpush1.msra.mxu0 %v159
    %175 = vmatprep.subr.mxu0 0.0
    %176 = vmatpush1.msra.mxu0 %v158
    %177 = vmatprep.subr.mxu0 0.0
    %178 = vmatpush1.msra.mxu0 %v157
    %179 = vmatprep.subr.mxu0 0.0
    %180 = vmatpush1.msra.mxu0 %v156
    %181 = vmatprep.subr.mxu0 0.0
    %182 = vmatpush1.msra.mxu0 %v155
    %183 = vmatprep.subr.mxu0 0.0
    %184 = vmatpush1.msra.mxu0 %v154
    %185 = vmatprep.subr.mxu0 0.0
    %186 = vmatpush1.msra.mxu0 %v153
    %187 = vmatprep.subr.mxu0 0.0
    %188 = vmatpush1.msra.mxu0 %v152
    %189 = vmatprep.subr.mxu0 0.0
    %190 = vmatpush1.msra.mxu0 %v151
    %191 = vmatprep.subr.mxu0 0.0
    %192 = vmatpush1.msra.mxu0 %v150
    %193 = vmatprep.subr.mxu0 0.0
    %194 = vmatpush1.msra.mxu0 %v149
    %195 = vmatprep.subr.mxu0 0.0
    %196 = vmatpush1.msra.mxu0 %v148
    %197 = vmatprep.subr.mxu0 0.0
    %198 = vmatpush1.msra.mxu0 %v147
    %199 = vmatprep.subr.mxu0 0.0
    %200 = vmatpush1.msra.mxu0 %v146
    %201 = vmatprep.subr.mxu0 0.0
    %202 = vmatpush2.msra.mxu0 0.0
    %203 = vmatprep.subr.mxu0 0.0
    %204 = vmatpush2.msra.mxu0 0.0
    %205 = vmatprep.subr.mxu0 0.0
    %206 = vmatpush2.msra.mxu0 0.0
    %207 = vmatprep.subr.mxu0 0.0
    %208 = vmatpush2.msra.mxu0 0.0
    %209 = vmatprep.subr.mxu0 0.0
    %210 = vmatpush2.msra.mxu0 0.0
    %211 = vmatprep.subr.mxu0 0.0
    %212 = vmatpush2.msra.mxu0 0.0
    %213 = vmatprep.subr.mxu0 0.0
    %214 = vmatpush2.msra.mxu0 0.0
    %215 = vmatprep.subr.mxu0 0.0
    %216 = vmatpush2.msra.mxu0 0.0
    %217 = vmatprep.subr.mxu0 0.0
    %218 = vmatpush2.msra.mxu0 0.0
    %219 = vmatprep.subr.mxu0 0.0
    %220 = vmatpush2.msra.mxu0 0.0
    %221 = vmatprep.subr.mxu0 0.0
    %222 = vmatpush2.msra.mxu0 0.0
    %223 = vmatprep.subr.mxu0 0.0
    %224 = vmatpush2.msra.mxu0 0.0
    %225 = vmatprep.subr.mxu0 0.0
    %226 = vmatpush2.msra.mxu0 0.0
    %227 = vmatprep.subr.mxu0 0.0
    %228 = vmatpush2.msra.mxu0 0.0
    %229 = vmatprep.subr.mxu0 0.0
    %230 = vmatpush2.msra.mxu0 0.0
    %231 = vmatprep.subr.mxu0 0.0
    %232 = vmatpush2.msra.mxu0 0.0
    %233 = vmatprep.mubr.f32.mxu0 0.0
    %234 = vmatmul.mubr.f32.gmra.mxu0 %v145
    %v235 = vpop.f32.mrf.mxu0
    %v236 = vadd.f32 %v167, %v235
    %v237 = vpop.f32.mrf.mxu0
    %238 = vdwg.mxu0
    %v239 = vmax.f32 %v236, 0.0
    %v240 = vld [vmem:[%s5] sm:$0xff]
    %v241 = vld [vmem:[%s5 + $0x8] sm:$0xff]
    %v242 = vld [vmem:[%s5 + $0x10] sm:$0xff]
    %v243 = vld [vmem:[%s5 + $0x18] sm:$0xff]
    %v244 = vld [vmem:[%s5 + $0x20] sm:$0xff]
    %v245 = vld [vmem:[%s5 + $0x28] sm:$0xff]
    %v246 = vld [vmem:[%s5 + $0x30] sm:$0xff]
    %v247 = vld [vmem:[%s5 + $0x38] sm:$0xff]
    %v248 = vld [vmem:[%s5 + $0x40] sm:$0xff]
    %v249 = vld [vmem:[%s5 + $0x48] sm:$0xff]
    %v250 = vld [vmem:[%s5 + $0x50] sm:$0xff]
    %v251 = vld [vmem:[%s5 + $0x58] sm:$0xff]
    %v252 = vld [vmem:[%s5 + $0x60] sm:$0xff]
    %v253 = vld [vmem:[%s5 + $0x68] sm:$0xff]
    %v254 = vld [vmem:[%s5 + $0x70] sm:$0xff]
    %v255 = vld [vmem:[%s5 + $0x78] sm:$0xff]
    %v256 = vld [vmem:[%s6] sm:$0x1]
    %v258 = vlaneseq
    %v259 = vshrl.u32 %v258, 7
    %v260 = vsub.s32 0, %v259
    %v261 = vrot.slane %v256, %v260
    %263 = vmatprep.subr.mxu0 0.0
    %264 = vmatpush1.msra.mxu0 %v255
    %265 = vmatprep.subr.mxu0 0.0
    %266 = vmatpush1.msra.mxu0 %v254
    %267 = vmatprep.subr.mxu0 0.0
    %268 = vmatpush1.msra.mxu0 %v253
    %269 = vmatprep.subr.mxu0 0.0
    %270 = vmatpush1.msra.mxu0 %v252
    %271 = vmatprep.subr.mxu0 0.0
    %272 = vmatpush1.msra.mxu0 %v251
    %273 = vmatprep.subr.mxu0 0.0
    %274 = vmatpush1.msra.mxu0 %v250
    %275 = vmatprep.subr.mxu0 0.0
    %276 = vmatpush1.msra.mxu0 %v249
    %277 = vmatprep.subr.mxu0 0.0
    %278 = vmatpush1.msra.mxu0 %v248
    %279 = vmatprep.subr.mxu0 0.0
    %280 = vmatpush1.msra.mxu0 %v247
    %281 = vmatprep.subr.mxu0 0.0
    %282 = vmatpush1.msra.mxu0 %v246
    %283 = vmatprep.subr.mxu0 0.0
    %284 = vmatpush1.msra.mxu0 %v245
    %285 = vmatprep.subr.mxu0 0.0
    %286 = vmatpush1.msra.mxu0 %v244
    %287 = vmatprep.subr.mxu0 0.0
    %288 = vmatpush1.msra.mxu0 %v243
    %289 = vmatprep.subr.mxu0 0.0
    %290 = vmatpush1.msra.mxu0 %v242
    %291 = vmatprep.subr.mxu0 0.0
    %292 = vmatpush1.msra.mxu0 %v241
    %293 = vmatprep.subr.mxu0 0.0
    %294 = vmatpush1.msra.mxu0 %v240
    %295 = vmatprep.subr.mxu0 0.0
    %296 = vmatpush2.msra.mxu0 0.0
    %297 = vmatprep.subr.mxu0 0.0
    %298 = vmatpush2.msra.mxu0 0.0
    %299 = vmatprep.subr.mxu0 0.0
    %300 = vmatpush2.msra.mxu0 0.0
    %301 = vmatprep.subr.mxu0 0.0
    %302 = vmatpush2.msra.mxu0 0.0
    %303 = vmatprep.subr.mxu0 0.0
    %304 = vmatpush2.msra.mxu0 0.0
    %305 = vmatprep.subr.mxu0 0.0
    %306 = vmatpush2.msra.mxu0 0.0
    %307 = vmatprep.subr.mxu0 0.0
    %308 = vmatpush2.msra.mxu0 0.0
    %309 = vmatprep.subr.mxu0 0.0
    %310 = vmatpush2.msra.mxu0 0.0
    %311 = vmatprep.subr.mxu0 0.0
    %312 = vmatpush2.msra.mxu0 0.0
    %313 = vmatprep.subr.mxu0 0.0
    %314 = vmatpush2.msra.mxu0 0.0
    %315 = vmatprep.subr.mxu0 0.0
    %316 = vmatpush2.msra.mxu0 0.0
    %317 = vmatprep.subr.mxu0 0.0
    %318 = vmatpush2.msra.mxu0 0.0
    %319 = vmatprep.subr.mxu0 0.0
    %320 = vmatpush2.msra.mxu0 0.0
    %321 = vmatprep.subr.mxu0 0.0
    %322 = vmatpush2.msra.mxu0 0.0
    %323 = vmatprep.subr.mxu0 0.0
    %324 = vmatpush2.msra.mxu0 0.0
    %325 = vmatprep.subr.mxu0 0.0
    %326 = vmatpush2.msra.mxu0 0.0
    %327 = vmatprep.mubr.f32.mxu0 0.0
    %328 = vmatmul.mubr.f32.gmra.mxu0 %v239
    %v329 = vpop.f32.mrf.mxu0
    %v330 = vadd.f32 %v261, %v329
    %v331 = vpop.f32.mrf.mxu0
    %332 = vdwg.mxu0
    %vm333 = vcmp.ge.f32.partialorder %v330, 0.0
    %v334 = vsel %vm333, 1.0, -1.0
    %vm335 = vcmask 64512
    %336 = vst.msk [vmem:[#allocation7] sm:$0xff] %vm335, %v334
    // Predicated region
    $region38: #{tpu_custom_call.1} parent=1 // pred_check
      _
    $region39: #{tpu_custom_call.1} parent=1 // pred_check_branch
      %338 = sbr.rel (0) target = $region41
    $region40: #{tpu_custom_call.1} parent=1 // pred_region
      %s340 = ssub.s32 128, 128
      %341 = vsyncadd [#allocation4], %s340
      %s343 = sshll.u32 [#allocation7], 4
      %s344 = int_to_ptr.vmem [resolvable:$true] %s343
      %346 = dma.vmem_to_hbm [thread:$0]  %s344, 128, %s7, [#allocation4]
    $region41: #{tpu_custom_call.1} parent=1 // pred_fallthru
      _
    // Predicated region
    $region42: #{tpu_custom_call.1} parent=1 // pred_check
      _
    $region43: #{tpu_custom_call.1} parent=1 // pred_check_branch
      %348 = sbr.rel (0) target = $region45
    $region44: #{tpu_custom_call.1} parent=1 // pred_region
      %349 = dma.done [#allocation4], 128
    $region45: #{tpu_custom_call.1} parent=1 // pred_fallthru
      _
    %350 = vsyncpa [#allocation3], 1
    %351 = vsyncpa [#allocation6], 1
    %352 = vsyncpa [#allocation4], 1

</llo_original>
